<compile_context>
chip_gen: v5e
topology: v5e:2x2
jax: 0.10.0
libtpu: 0.0.40
codegen_flags: <defaults>
</compile_context>

<pallas_src>
import math
import numpy as np
import jax
import jax.numpy as jnp
from jax.experimental import pallas as pl
from jax.experimental.pallas import tpu as pltpu


# ---------------------------------------------------------------- positional enc
def get_positional(seq_len, dim):
    pe = np.zeros((seq_len, dim), dtype=np.float32)
    normalizer = 1.0 / (1.0 + math.exp(-1))
    for pos in range(seq_len):
        for i in range(0, dim, 2):
            pe[pos, i] = normalizer * math.sin(pos / 10000 ** (2 * i / dim))
            pe[pos, i + 1] = normalizer * math.cos(pos / 10000 ** (2 * (i + 1) / dim))
    return pe  # (seq_len, dim)


# ---------------------------------------------------------------- Pallas kernel
def encoder_kernel(aug_ref, w_ref, add_ref, out_ref):
    # Single fused matmul: LHS rows carry [patch pixels | question] and the RHS is the
    # block-diagonal [[Wp, 0], [0, Wq]] weight, so one MXU pass produces both feature
    # halves.  add_ref carries cls / (conv_b + pe) / lin_b pre-folded per sequence row.
    # One full-block store (lane-dense last dim == full output width) — no partial
    # column stores, no per-batch loops.
    out_ref[...] = (
        jnp.dot(aug_ref[...], w_ref[...], preferred_element_type=jnp.float32)
        + add_ref[...]
    )


# ---------------------------------------------------------------- chunk selection
def _pick_chunk(B):
    # Batch elements per grid step:
    #  * multiple of 4 so rows = bc*26 is divisible by 8 (sublane tiling rule)
    #  * ~B/2 so the "parallel" grid axis has >=2 steps for v7x's two TensorCores
    #  * capped at 48 so the double-buffered LHS block (48*26*896*4 B ~= 4.5 MB per
    #    buffer) stays under v5e's 16 MiB default scoped VMEM (and v7x's 64 MiB total)
    bc_cap = 48
    target = max(4, 4 * ((B + 7) // 8))            # ~B/2 rounded up to a multiple of 4
    bc = min(bc_cap, target)
    n_chunks = (B + bc - 1) // bc
    bc = ((B + n_chunks - 1) // n_chunks + 3) // 4 * 4   # rebalance to minimize padding
    return min(bc_cap, max(4, bc))


# ---------------------------------------------------------------- wrapper
def encoder_forward(x, que, params, *, patch=15):
    B, C, Himg, Wimg = x.shape
    nh, nw = Himg // patch, Wimg // patch
    n_patches = nh * nw
    seq = n_patches + 1
    hidden = params["conv_b"].shape[0]
    Q = que.shape[1]
    K = C * patch * patch
    Kp = ((K + 127) // 128) * 128        # 675 -> 768 (lane-aligned contraction)
    Qp = ((Q + 127) // 128) * 128        # 18  -> 128
    Kd = Kp + Qp                         # fused contraction dim (896)

    bc = _pick_chunk(B)
    B_pad = ((B + bc - 1) // bc) * bc
    n_chunks = B_pad // bc
    rows = bc * seq

    # ---- layout glue (trace-time XLA ops) ----
    # Non-overlapping patches, flattened in (c, kh, kw) order (matches Conv2d weights).
    patches = x.reshape(B, C, nh, patch, nw, patch)
    patches = patches.transpose(0, 2, 4, 1, 3, 5).reshape(B, n_patches, K)
    if B_pad > B:                                           # pad batch to a chunk multiple
        patches = jnp.pad(patches, ((0, B_pad - B), (0, 0), (0, 0)))
        que = jnp.pad(que, ((0, B_pad - B), (0, 0)))

    # Prepend a zero "cls" row per batch element and zero-pad K -> Kp (lane multiple).
    patches_aug = jnp.pad(patches, ((0, 0), (1, 0), (0, Kp - K)))      # (B_pad, seq, Kp)
    # Question padded to Qp and repeated across the sequence (broadcast is free-ish and
    # lets the kernel do a single fused matmul with one full-width store).
    que_p = jnp.pad(que, ((0, 0), (0, Qp - Q)))                        # (B_pad, Qp)
    que_rep = jnp.broadcast_to(que_p[:, None, :], (B_pad, seq, Qp))    # (B_pad, seq, Qp)
    aug = jnp.concatenate([patches_aug, que_rep], axis=-1)             # (B_pad, seq, Kd)
    aug_flat = aug.reshape(B_pad * seq, Kd)

    # Block-diagonal fused weight: [[Wp, 0], [0, Wq]]  -> (Kd, 2*hidden)
    wp = params["conv_w"].reshape(hidden, K).T                         # (K, hidden)
    wq = params["lin_w"].T                                             # (Q, hidden)
    W = jnp.zeros((Kd, 2 * hidden), jnp.float32)
    W = W.at[:K, :hidden].set(wp)
    W = W.at[Kp:Kp + Q, hidden:].set(wq)

    # Folded additive term per sequence row:
    #   left half : row 0 = cls token, rows 1.. = conv bias + positional encoding
    #   right half: lin_b (question-embedding bias) on every row
    add_left = jnp.concatenate(
        [params["cls"].reshape(1, hidden),
         params["pe"] + params["conv_b"][None, :]], axis=0)            # (seq, hidden)
    add_right = jnp.broadcast_to(params["lin_b"][None, :], (seq, hidden))
    add_seq = jnp.concatenate([add_left, add_right], axis=-1)          # (seq, 2*hidden)
    add_chunk = jnp.tile(add_seq, (bc, 1))                             # (rows, 2*hidden)

    out_flat = pl.pallas_call(
        encoder_kernel,
        out_shape=jax.ShapeDtypeStruct((B_pad * seq, 2 * hidden), jnp.float32),
        grid_spec=pltpu.PrefetchScalarGridSpec(
            num_scalar_prefetch=0,
            grid=(n_chunks,),
            in_specs=[
                pl.BlockSpec((rows, Kd), lambda i: (i, 0)),            # fused LHS chunk
                pl.BlockSpec((Kd, 2 * hidden), lambda i: (0, 0)),      # W (resident)
                pl.BlockSpec((rows, 2 * hidden), lambda i: (0, 0)),    # add (resident)
            ],
            out_specs=pl.BlockSpec((rows, 2 * hidden), lambda i: (i, 0)),
        ),
        compiler_params=pltpu.CompilerParams(
            dimension_semantics=("parallel",)),
    )(aug_flat, W, add_chunk)

    # Free reshape + drop batch padding.
    return out_flat.reshape(B_pad, seq, 2 * hidden)[:B]


# ---------------------------------------------------------------- reference (pure JAX)
def encoder_reference(x, que, params, *, patch=15):
    B, C, Himg, Wimg = x.shape
    nh, nw = Himg // patch, Wimg // patch
    n_patches = nh * nw
    hidden = params["conv_b"].shape[0]
    patches = x.reshape(B, C, nh, patch, nw, patch)
    patches = patches.transpose(0, 2, 4, 1, 3, 5).reshape(B, n_patches, C * patch * patch)
    pemb = patches @ params["conv_w"].reshape(hidden, -1).T + params["conv_b"]
    qemb = que @ params["lin_w"].T + params["lin_b"]                   # (B, hidden)
    xx = pemb + params["pe"][None]
    cls = jnp.broadcast_to(params["cls"].reshape(1, 1, hidden), (B, 1, hidden))
    emb = jnp.concatenate([cls, xx], axis=1)
    qexp = jnp.broadcast_to(qemb[:, None, :], (B, n_patches + 1, hidden))
    return jnp.concatenate([emb, qexp], axis=-1)


# ---------------------------------------------------------------- main
if __name__ == "__main__":
    # img_size = 75 -> 5x5 = 25 patches of 15x15, question_size = 18 (as in the model)
    B, C, HW = 2, 3, 75
    hidden = 32
    question_size = 18
    patch = 15
    n_patches = (HW // patch) ** 2

    key = jax.random.PRNGKey(0)
    k = jax.random.split(key, 7)
    params = {
        "conv_w": 0.05 * jax.random.normal(k[0], (hidden, C, patch, patch), jnp.float32),
        "conv_b": 0.05 * jax.random.normal(k[1], (hidden,), jnp.float32),
        "lin_w": 0.05 * jax.random.normal(k[2], (hidden, question_size), jnp.float32),
        "lin_b": 0.05 * jax.random.normal(k[3], (hidden,), jnp.float32),
        "cls":   jax.random.normal(k[4], (1, 1, hidden), jnp.float32),
        "pe":    jnp.asarray(get_positional(n_patches, hidden)),
    }

    x = jax.random.normal(k[5], (B, C, HW, HW), jnp.float32)           # NCHW, like PyTorch
    que = jax.random.normal(k[6], (B, question_size), jnp.float32)

    out = encoder_forward(x, que, params, patch=patch)
    out = jax.block_until_ready(out)

    ref = encoder_reference(x, que, params, patch=patch)
    assert out.shape == (B, n_patches + 1, 2 * hidden), out.shape
    assert jnp.allclose(out, ref, atol=1e-4, rtol=1e-4), float(jnp.max(jnp.abs(out - ref)))
    print("KERNEL_OK")
</pallas_src>

<mosaic_0001>
module attributes {stable_mosaic.version = 11 : i64} {
  func.func @encoder_kernel(%arg0: i32, %arg1: memref<104x896xf32, #tpu.memory_space<vmem>>, %arg2: memref<896x64xf32, #tpu.memory_space<vmem>>, %arg3: memref<104x64xf32, #tpu.memory_space<vmem>>, %arg4: memref<104x64xf32, #tpu.memory_space<vmem>>) attributes {dimension_semantics = [#tpu.dimension_semantics<parallel>], iteration_bounds = array<i64: 1>, scalar_prefetch = 0 : i64, scratch_operands = 0 : i64, tpu.core_type = #tpu.core_type<tc>, window_params = [{transform_indices = @transform_0, window_bounds = array<i64: 104, 896>}, {pipeline_mode = #tpu.pipeline_mode<synchronous>, transform_indices = @transform_1, window_bounds = array<i64: 896, 64>}, {pipeline_mode = #tpu.pipeline_mode<synchronous>, transform_indices = @transform_2, window_bounds = array<i64: 104, 64>}, {transform_indices = @transform_3, window_bounds = array<i64: 104, 64>}]} {
    %c0 = arith.constant 0 : index
    %c0_0 = arith.constant 0 : index
    %0 = vector.load %arg1[%c0, %c0_0] : memref<104x896xf32, #tpu.memory_space<vmem>>, vector<104x896xf32>
    %c0_1 = arith.constant 0 : index
    %c0_2 = arith.constant 0 : index
    %1 = vector.load %arg2[%c0_1, %c0_2] : memref<896x64xf32, #tpu.memory_space<vmem>>, vector<896x64xf32>
    %cst = arith.constant dense<0.000000e+00> : vector<104x64xf32>
    %2 = tpu.matmul %0, %1, %cst {dimension_numbers = #tpu.dot_dimension_numbers<[1], [0], [0], [1], [0, 0, 1, 1], [], []>} : vector<104x896xf32>, vector<896x64xf32>, vector<104x64xf32> -> vector<104x64xf32>
    %c0_3 = arith.constant 0 : index
    %c0_4 = arith.constant 0 : index
    %3 = vector.load %arg3[%c0_3, %c0_4] : memref<104x64xf32, #tpu.memory_space<vmem>>, vector<104x64xf32>
    %4 = arith.addf %2, %3 : vector<104x64xf32>
    %c0_5 = arith.constant 0 : index
    %c0_6 = arith.constant 0 : index
    %5 = vector.load %arg4[%c0_5, %c0_6] : memref<104x64xf32, #tpu.memory_space<vmem>>, vector<104x64xf32>
    tpu.vector_store %arg4[%c0_5, %c0_6], %4 {strides = array<i32>} : memref<104x64xf32, #tpu.memory_space<vmem>>, vector<104x64xf32>,
    return
  }
  func.func @transform_0(%arg0: i32) -> (i32, i32) {
    %c0_i32 = arith.constant 0 : i32
    %c0_i32_0 = arith.constant 0 : i32
    return %arg0, %c0_i32 : i32, i32
  }
  func.func @transform_1(%arg0: i32) -> (i32, i32) {
    %c0_i32 = arith.constant 0 : i32
    %c0_i32_0 = arith.constant 0 : i32
    %c0_i32_1 = arith.constant 0 : i32
    return %c0_i32, %c0_i32_0 : i32, i32
  }
  func.func @transform_2(%arg0: i32) -> (i32, i32) {
    %c0_i32 = arith.constant 0 : i32
    %c0_i32_0 = arith.constant 0 : i32
    %c0_i32_1 = arith.constant 0 : i32
    return %c0_i32, %c0_i32_0 : i32, i32
  }
  func.func @transform_3(%arg0: i32) -> (i32, i32) {
    %c0_i32 = arith.constant 0 : i32
    %c0_i32_0 = arith.constant 0 : i32
    return %arg0, %c0_i32 : i32, i32
  }
}

</mosaic_0001>

<llo_original>
// kernel: tpu_custom_call.1
$region0: #{tpu_custom_call.1}
  #allocation0 [shape = 'u32[]', space=smem, size = 0x4, offset = 0x4, fixed_abs, tag = 'smem constant byte address 0x4 - core index']
  #allocation1 [shape = 'u32[72,128]{1,0:T(1,128)}', space=vmem, size = 0x9000, scoped, tag = 'internal scratch']
  %s0 = inlined_call_operand.vmem [shape: f32[104,896], index: 0, kind: input, shape index: {}]
  %s1 = inlined_call_operand.vmem [shape: f32[896,64], index: 1, kind: input, shape index: {}]
  %s2 = inlined_call_operand.vmem [shape: f32[104,64], index: 2, kind: input, shape index: {}]
  %s3 = inlined_call_operand.vmem [shape: f32[104,64], index: 3, kind: output, shape index: {}]
  %s4 = sld [smem:[#allocation0]]
  $region22: #{tpu_custom_call.1} parent=0
    _
  %s6 = ssub.s32 1, %s4
  %s7 = scalar_select 0, %s6, %s4
  // Predicated region
  $region2: #{tpu_custom_call.1} parent=0 // pred_check
    _
  $region3: #{tpu_custom_call.1} parent=0 // pred_check_branch
    %9 = sbr.rel (0) target = $region5
  $region4: #{tpu_custom_call.1} parent=0 // pred_region
    _
  $region5: #{tpu_custom_call.1} parent=0 // pred_fallthru
    _
  // Predicated region
  $region6: #{tpu_custom_call.1} parent=0 // pred_check
    _
  $region7: #{tpu_custom_call.1} parent=0 // pred_check_branch
    %11 = sbr.rel (0) target = $region9
  $region8: #{tpu_custom_call.1} parent=0 // pred_region
    _
  $region9: #{tpu_custom_call.1} parent=0 // pred_fallthru
    _
  // Predicated region
  $region10: #{tpu_custom_call.1} parent=0 // pred_check
    _
  $region11: #{tpu_custom_call.1} parent=0 // pred_check_branch
    %13 = sbr.rel (0) target = $region13
  $region12: #{tpu_custom_call.1} parent=0 // pred_region
    _
  $region13: #{tpu_custom_call.1} parent=0 // pred_fallthru
    _
  %v14 = vld [vmem:[%s0] sm:$0xff]
  %v15 = vld [vmem:[%s0 + $0x8] sm:$0xff]
  %v16 = vld [vmem:[%s0 + $0x10] sm:$0xff]
  %v17 = vld [vmem:[%s0 + $0x18] sm:$0xff]
  %v18 = vld [vmem:[%s0 + $0x20] sm:$0xff]
  %v19 = vld [vmem:[%s0 + $0x28] sm:$0xff]
  %v20 = vld [vmem:[%s0 + $0x30] sm:$0xff]
  %v21 = vld [vmem:[%s0 + $0x38] sm:$0xff]
  %v22 = vld [vmem:[%s0 + $0x40] sm:$0xff]
  %v23 = vld [vmem:[%s0 + $0x48] sm:$0xff]
  %v24 = vld [vmem:[%s0 + $0x50] sm:$0xff]
  %v25 = vld [vmem:[%s0 + $0x58] sm:$0xff]
  %v26 = vld [vmem:[%s0 + $0x60] sm:$0xff]
  %v27 = vld [vmem:[%s0 + $0x68] sm:$0xff]
  %v28 = vld [vmem:[%s0 + $0x70] sm:$0xff]
  %v29 = vld [vmem:[%s0 + $0x78] sm:$0xff]
  %v30 = vld [vmem:[%s0 + $0x80] sm:$0xff]
  %v31 = vld [vmem:[%s0 + $0x88] sm:$0xff]
  %v32 = vld [vmem:[%s0 + $0x90] sm:$0xff]
  %v33 = vld [vmem:[%s0 + $0x98] sm:$0xff]
  %v34 = vld [vmem:[%s0 + $0xa0] sm:$0xff]
  %v35 = vld [vmem:[%s0 + $0xa8] sm:$0xff]
  %v36 = vld [vmem:[%s0 + $0xb0] sm:$0xff]
  %v37 = vld [vmem:[%s0 + $0xb8] sm:$0xff]
  %v38 = vld [vmem:[%s0 + $0xc0] sm:$0xff]
  %v39 = vld [vmem:[%s0 + $0xc8] sm:$0xff]
  %v40 = vld [vmem:[%s0 + $0xd0] sm:$0xff]
  %v41 = vld [vmem:[%s0 + $0xd8] sm:$0xff]
  %v42 = vld [vmem:[%s0 + $0xe0] sm:$0xff]
  %v43 = vld [vmem:[%s0 + $0xe8] sm:$0xff]
  %v44 = vld [vmem:[%s0 + $0xf0] sm:$0xff]
  %v45 = vld [vmem:[%s0 + $0xf8] sm:$0xff]
  %v46 = vld [vmem:[%s0 + $0x100] sm:$0xff]
  %v47 = vld [vmem:[%s0 + $0x108] sm:$0xff]
  %v48 = vld [vmem:[%s0 + $0x110] sm:$0xff]
  %v49 = vld [vmem:[%s0 + $0x118] sm:$0xff]
  %v50 = vld [vmem:[%s0 + $0x120] sm:$0xff]
  %v51 = vld [vmem:[%s0 + $0x128] sm:$0xff]
  %v52 = vld [vmem:[%s0 + $0x130] sm:$0xff]
  %v53 = vld [vmem:[%s0 + $0x138] sm:$0xff]
  %v54 = vld [vmem:[%s0 + $0x140] sm:$0xff]
  %v55 = vld [vmem:[%s0 + $0x148] sm:$0xff]
  %v56 = vld [vmem:[%s0 + $0x150] sm:$0xff]
  %v57 = vld [vmem:[%s0 + $0x158] sm:$0xff]
  %v58 = vld [vmem:[%s0 + $0x160] sm:$0xff]
  %v59 = vld [vmem:[%s0 + $0x168] sm:$0xff]
  %v60 = vld [vmem:[%s0 + $0x170] sm:$0xff]
  %v61 = vld [vmem:[%s0 + $0x178] sm:$0xff]
  %v62 = vld [vmem:[%s0 + $0x180] sm:$0xff]
  %v63 = vld [vmem:[%s0 + $0x188] sm:$0xff]
  %v64 = vld [vmem:[%s0 + $0x190] sm:$0xff]
  %v65 = vld [vmem:[%s0 + $0x198] sm:$0xff]
  %v66 = vld [vmem:[%s0 + $0x1a0] sm:$0xff]
  %v67 = vld [vmem:[%s0 + $0x1a8] sm:$0xff]
  %v68 = vld [vmem:[%s0 + $0x1b0] sm:$0xff]
  %v69 = vld [vmem:[%s0 + $0x1b8] sm:$0xff]
  %v70 = vld [vmem:[%s0 + $0x1c0] sm:$0xff]
  %v71 = vld [vmem:[%s0 + $0x1c8] sm:$0xff]
  %v72 = vld [vmem:[%s0 + $0x1d0] sm:$0xff]
  %v73 = vld [vmem:[%s0 + $0x1d8] sm:$0xff]
  %v74 = vld [vmem:[%s0 + $0x1e0] sm:$0xff]
  %v75 = vld [vmem:[%s0 + $0x1e8] sm:$0xff]
  %v76 = vld [vmem:[%s0 + $0x1f0] sm:$0xff]
  %v77 = vld [vmem:[%s0 + $0x1f8] sm:$0xff]
  %v78 = vld [vmem:[%s0 + $0x200] sm:$0xff]
  %v79 = vld [vmem:[%s0 + $0x208] sm:$0xff]
  %v80 = vld [vmem:[%s0 + $0x210] sm:$0xff]
  %v81 = vld [vmem:[%s0 + $0x218] sm:$0xff]
  %v82 = vld [vmem:[%s0 + $0x220] sm:$0xff]
  %v83 = vld [vmem:[%s0 + $0x228] sm:$0xff]
  %v84 = vld [vmem:[%s0 + $0x230] sm:$0xff]
  %v85 = vld [vmem:[%s0 + $0x238] sm:$0xff]
  %v86 = vld [vmem:[%s0 + $0x240] sm:$0xff]
  %v87 = vld [vmem:[%s0 + $0x248] sm:$0xff]
  %v88 = vld [vmem:[%s0 + $0x250] sm:$0xff]
  %v89 = vld [vmem:[%s0 + $0x258] sm:$0xff]
  %v90 = vld [vmem:[%s0 + $0x260] sm:$0xff]
  %v91 = vld [vmem:[%s0 + $0x268] sm:$0xff]
  %v92 = vld [vmem:[%s0 + $0x270] sm:$0xff]
  %v93 = vld [vmem:[%s0 + $0x278] sm:$0xff]
  %v94 = vld [vmem:[%s0 + $0x280] sm:$0xff]
  %v95 = vld [vmem:[%s0 + $0x288] sm:$0xff]
  %v96 = vld [vmem:[%s0 + $0x290] sm:$0xff]
  %v97 = vld [vmem:[%s0 + $0x298] sm:$0xff]
  %v98 = vld [vmem:[%s0 + $0x2a0] sm:$0xff]
  %v99 = vld [vmem:[%s0 + $0x2a8] sm:$0xff]
  %v100 = vld [vmem:[%s0 + $0x2b0] sm:$0xff]
  %v101 = vld [vmem:[%s0 + $0x2b8] sm:$0xff]
  %v102 = vld [vmem:[%s0 + $0x2c0] sm:$0xff]
  %v103 = vld [vmem:[%s0 + $0x2c8] sm:$0xff]
  %v104 = vld [vmem:[%s0 + $0x2d0] sm:$0xff]
  %v105 = vld [vmem:[%s1] sm:$0xff]
  %v106 = vld [vmem:[%s1 + $0x8] sm:$0xff]
  %v107 = vld [vmem:[%s1 + $0x10] sm:$0xff]
  %v108 = vld [vmem:[%s1 + $0x18] sm:$0xff]
  %v109 = vld [vmem:[%s1 + $0x20] sm:$0xff]
  %v110 = vld [vmem:[%s1 + $0x28] sm:$0xff]
  %v111 = vld [vmem:[%s1 + $0x30] sm:$0xff]
  %v112 = vld [vmem:[%s1 + $0x38] sm:$0xff]
  %v113 = vld [vmem:[%s1 + $0x40] sm:$0xff]
  %v114 = vld [vmem:[%s1 + $0x48] sm:$0xff]
  %v115 = vld [vmem:[%s1 + $0x50] sm:$0xff]
  %v116 = vld [vmem:[%s1 + $0x58] sm:$0xff]
  %v117 = vld [vmem:[%s1 + $0x60] sm:$0xff]
  %v118 = vld [vmem:[%s1 + $0x68] sm:$0xff]
  %v119 = vld [vmem:[%s1 + $0x70] sm:$0xff]
  %v120 = vld [vmem:[%s1 + $0x78] sm:$0xff]
  %v121 = vld [vmem:[%s1 + $0x80] sm:$0xff]
  %v122 = vld [vmem:[%s1 + $0x88] sm:$0xff]
  %v123 = vld [vmem:[%s1 + $0x90] sm:$0xff]
  %v124 = vld [vmem:[%s1 + $0x98] sm:$0xff]
  %v125 = vld [vmem:[%s1 + $0xa0] sm:$0xff]
  %v126 = vld [vmem:[%s1 + $0xa8] sm:$0xff]
  %v127 = vld [vmem:[%s1 + $0xb0] sm:$0xff]
  %v128 = vld [vmem:[%s1 + $0xb8] sm:$0xff]
  %v129 = vld [vmem:[%s1 + $0xc0] sm:$0xff]
  %v130 = vld [vmem:[%s1 + $0xc8] sm:$0xff]
  %v131 = vld [vmem:[%s1 + $0xd0] sm:$0xff]
  %v132 = vld [vmem:[%s1 + $0xd8] sm:$0xff]
  %v133 = vld [vmem:[%s1 + $0xe0] sm:$0xff]
  %v134 = vld [vmem:[%s1 + $0xe8] sm:$0xff]
  %v135 = vld [vmem:[%s1 + $0xf0] sm:$0xff]
  %v136 = vld [vmem:[%s1 + $0xf8] sm:$0xff]
  %v137 = vld [vmem:[%s1 + $0x100] sm:$0xff]
  %v138 = vld [vmem:[%s1 + $0x108] sm:$0xff]
  %v139 = vld [vmem:[%s1 + $0x110] sm:$0xff]
  %v140 = vld [vmem:[%s1 + $0x118] sm:$0xff]
  %v141 = vld [vmem:[%s1 + $0x120] sm:$0xff]
  %v142 = vld [vmem:[%s1 + $0x128] sm:$0xff]
  %v143 = vld [vmem:[%s1 + $0x130] sm:$0xff]
  %v144 = vld [vmem:[%s1 + $0x138] sm:$0xff]
  %v145 = vld [vmem:[%s1 + $0x140] sm:$0xff]
  %v146 = vld [vmem:[%s1 + $0x148] sm:$0xff]
  %v147 = vld [vmem:[%s1 + $0x150] sm:$0xff]
  %v148 = vld [vmem:[%s1 + $0x158] sm:$0xff]
  %v149 = vld [vmem:[%s1 + $0x160] sm:$0xff]
  %v150 = vld [vmem:[%s1 + $0x168] sm:$0xff]
  %v151 = vld [vmem:[%s1 + $0x170] sm:$0xff]
  %v152 = vld [vmem:[%s1 + $0x178] sm:$0xff]
  %v153 = vld [vmem:[%s1 + $0x180] sm:$0xff]
  %v154 = vld [vmem:[%s1 + $0x188] sm:$0xff]
  %v155 = vld [vmem:[%s1 + $0x190] sm:$0xff]
  %v156 = vld [vmem:[%s1 + $0x198] sm:$0xff]
  %v157 = vld [vmem:[%s1 + $0x1a0] sm:$0xff]
  %v158 = vld [vmem:[%s1 + $0x1a8] sm:$0xff]
  %v159 = vld [vmem:[%s1 + $0x1b0] sm:$0xff]
  %v160 = vld [vmem:[%s1 + $0x1b8] sm:$0xff]
  %v161 = vld [vmem:[%s1 + $0x1c0] sm:$0xff]
  %v162 = vld [vmem:[%s1 + $0x1c8] sm:$0xff]
  %v163 = vld [vmem:[%s1 + $0x1d0] sm:$0xff]
  %v164 = vld [vmem:[%s1 + $0x1d8] sm:$0xff]
  %v165 = vld [vmem:[%s1 + $0x1e0] sm:$0xff]
  %v166 = vld [vmem:[%s1 + $0x1e8] sm:$0xff]
  %v167 = vld [vmem:[%s1 + $0x1f0] sm:$0xff]
  %v168 = vld [vmem:[%s1 + $0x1f8] sm:$0xff]
  %v169 = vld [vmem:[%s1 + $0x200] sm:$0xff]
  %v170 = vld [vmem:[%s1 + $0x208] sm:$0xff]
  %v171 = vld [vmem:[%s1 + $0x210] sm:$0xff]
  %v172 = vld [vmem:[%s1 + $0x218] sm:$0xff]
  %v173 = vld [vmem:[%s1 + $0x220] sm:$0xff]
  %v174 = vld [vmem:[%s1 + $0x228] sm:$0xff]
  %v175 = vld [vmem:[%s1 + $0x230] sm:$0xff]
  %v176 = vld [vmem:[%s1 + $0x238] sm:$0xff]
  %v177 = vld [vmem:[%s1 + $0x240] sm:$0xff]
  %v178 = vld [vmem:[%s1 + $0x248] sm:$0xff]
  %v179 = vld [vmem:[%s1 + $0x250] sm:$0xff]
  %v180 = vld [vmem:[%s1 + $0x258] sm:$0xff]
  %v181 = vld [vmem:[%s1 + $0x260] sm:$0xff]
  %v182 = vld [vmem:[%s1 + $0x268] sm:$0xff]
  %v183 = vld [vmem:[%s1 + $0x270] sm:$0xff]
  %v184 = vld [vmem:[%s1 + $0x278] sm:$0xff]
  %v185 = vld [vmem:[%s1 + $0x280] sm:$0xff]
  %v186 = vld [vmem:[%s1 + $0x288] sm:$0xff]
  %v187 = vld [vmem:[%s1 + $0x290] sm:$0xff]
  %v188 = vld [vmem:[%s1 + $0x298] sm:$0xff]
  %v189 = vld [vmem:[%s1 + $0x2a0] sm:$0xff]
  %v190 = vld [vmem:[%s1 + $0x2a8] sm:$0xff]
  %v191 = vld [vmem:[%s1 + $0x2b0] sm:$0xff]
  %v192 = vld [vmem:[%s1 + $0x2b8] sm:$0xff]
  %v193 = vld [vmem:[%s1 + $0x2c0] sm:$0xff]
  %v194 = vld [vmem:[%s1 + $0x2c8] sm:$0xff]
  %v195 = vld [vmem:[%s1 + $0x2d0] sm:$0xff]
  %v196 = vld [vmem:[%s1 + $0x2d8] sm:$0xff]
  %v197 = vld [vmem:[%s1 + $0x2e0] sm:$0xff]
  %v198 = vld [vmem:[%s1 + $0x2e8] sm:$0xff]
  %v199 = vld [vmem:[%s1 + $0x2f0] sm:$0xff]
  %v200 = vld [vmem:[%s1 + $0x2f8] sm:$0xff]
  %v201 = vld [vmem:[%s1 + $0x300] sm:$0xff]
  %v202 = vld [vmem:[%s1 + $0x308] sm:$0xff]
  %v203 = vld [vmem:[%s1 + $0x310] sm:$0xff]
  %v204 = vld [vmem:[%s1 + $0x318] sm:$0xff]
  %v205 = vld [vmem:[%s1 + $0x320] sm:$0xff]
  %v206 = vld [vmem:[%s1 + $0x328] sm:$0xff]
  %v207 = vld [vmem:[%s1 + $0x330] sm:$0xff]
  %v208 = vld [vmem:[%s1 + $0x338] sm:$0xff]
  %v209 = vld [vmem:[%s1 + $0x340] sm:$0xff]
  %v210 = vld [vmem:[%s1 + $0x348] sm:$0xff]
  %v211 = vld [vmem:[%s1 + $0x350] sm:$0xff]
  %v212 = vld [vmem:[%s1 + $0x358] sm:$0xff]
  %v213 = vld [vmem:[%s1 + $0x360] sm:$0xff]
  %v214 = vld [vmem:[%s1 + $0x368] sm:$0xff]
  %v215 = vld [vmem:[%s1 + $0x370] sm:$0xff]
  %v216 = vld [vmem:[%s1 + $0x378] sm:$0xff]
  %v217 = vld [vmem:[%s2] sm:$0xff]
  %v218 = vld [vmem:[%s2 + $0x8] sm:$0xff]
  %v219 = vld [vmem:[%s2 + $0x10] sm:$0xff]
  %v220 = vld [vmem:[%s2 + $0x18] sm:$0xff]
  %v221 = vld [vmem:[%s2 + $0x20] sm:$0xff]
  %v222 = vld [vmem:[%s2 + $0x28] sm:$0xff]
  %v223 = vld [vmem:[%s2 + $0x30] sm:$0xff]
  %v224 = vld [vmem:[%s2 + $0x38] sm:$0xff]
  %v225 = vld [vmem:[%s2 + $0x40] sm:$0xff]
  %v226 = vld [vmem:[%s2 + $0x48] sm:$0xff]
  %v227 = vld [vmem:[%s2 + $0x50] sm:$0xff]
  %v228 = vld [vmem:[%s2 + $0x58] sm:$0xff]
  %v229 = vld [vmem:[%s2 + $0x60] sm:$0xff]
  %230 = vmatpush.msra.mxu0 %v120
  %231 = vmatpush.msra.mxu0 %v119
  %232 = vmatpush.msra.mxu0 %v118
  %233 = vmatpush.msra.mxu0 %v117
  %234 = vmatpush.msra.mxu0 %v116
  %235 = vmatpush.msra.mxu0 %v115
  %236 = vmatpush.msra.mxu0 %v114
  %237 = vmatpush.msra.mxu0 %v113
  %238 = vmatpush.msra.mxu0 %v112
  %239 = vmatpush.msra.mxu0 %v111
  %240 = vmatpush.msra.mxu0 %v110
  %241 = vmatpush.msra.mxu0 %v109
  %242 = vmatpush.msra.mxu0 %v108
  %243 = vmatpush.msra.mxu0 %v107
  %244 = vmatpush.msra.mxu0 %v106
  %245 = vmatpush.msra.mxu0 %v105
  %246 = vmatmul.f32.gmra.mxu0 %v14
  %v247 = vpop.f32.mrf.mxu0
  %v248 = vadd.f32 %v217, %v247
  %249 = vmatmul.f32.gmra.mxu0 %v21
  %v250 = vpop.f32.mrf.mxu0
  %v251 = vadd.f32 %v218, %v250
  %252 = vmatmul.f32.gmra.mxu0 %v28
  %v253 = vpop.f32.mrf.mxu0
  %v254 = vadd.f32 %v219, %v253
  %255 = vmatmul.f32.gmra.mxu0 %v35
  %v256 = vpop.f32.mrf.mxu0
  %v257 = vadd.f32 %v220, %v256
  %258 = vmatmul.f32.gmra.mxu0 %v42
  %v259 = vpop.f32.mrf.mxu0
  %v260 = vadd.f32 %v221, %v259
  %261 = vmatmul.f32.gmra.mxu0 %v49
  %v262 = vpop.f32.mrf.mxu0
  %v263 = vadd.f32 %v222, %v262
  %264 = vmatmul.f32.gmra.mxu0 %v56
  %v265 = vpop.f32.mrf.mxu0
  %v266 = vadd.f32 %v223, %v265
  %267 = vmatmul.f32.gmra.mxu0 %v63
  %v268 = vpop.f32.mrf.mxu0
  %v269 = vadd.f32 %v224, %v268
  %270 = vmatmul.f32.gmra.mxu0 %v70
  %v271 = vpop.f32.mrf.mxu0
  %v272 = vadd.f32 %v225, %v271
  %273 = vmatmul.f32.gmra.mxu0 %v77
  %v274 = vpop.f32.mrf.mxu0
  %v275 = vadd.f32 %v226, %v274
  %276 = vmatmul.f32.gmra.mxu0 %v84
  %v277 = vpop.f32.mrf.mxu0
  %v278 = vadd.f32 %v227, %v277
  %279 = vmatmul.f32.gmra.mxu0 %v91
  %v280 = vpop.f32.mrf.mxu0
  %v281 = vadd.f32 %v228, %v280
  %282 = vmatmul.f32.gmra.mxu0 %v98
  %v283 = vpop.f32.mrf.mxu0
  %v284 = vadd.f32 %v229, %v283
  %285 = vdwg.mxu0
  %286 = vmatpush.msra.mxu0 %v136
  %287 = vmatpush.msra.mxu0 %v135
  %288 = vmatpush.msra.mxu0 %v134
  %289 = vmatpush.msra.mxu0 %v133
  %290 = vmatpush.msra.mxu0 %v132
  %291 = vmatpush.msra.mxu0 %v131
  %292 = vmatpush.msra.mxu0 %v130
  %293 = vmatpush.msra.mxu0 %v129
  %294 = vmatpush.msra.mxu0 %v128
  %295 = vmatpush.msra.mxu0 %v127
  %296 = vmatpush.msra.mxu0 %v126
  %297 = vmatpush.msra.mxu0 %v125
  %298 = vmatpush.msra.mxu0 %v124
  %299 = vmatpush.msra.mxu0 %v123
  %300 = vmatpush.msra.mxu0 %v122
  %301 = vmatpush.msra.mxu0 %v121
  %302 = vmatmul.f32.gmra.mxu0 %v15
  %v303 = vpop.f32.mrf.mxu0
  %v304 = vadd.f32 %v248, %v303
  %305 = vmatmul.f32.gmra.mxu0 %v22
  %v306 = vpop.f32.mrf.mxu0
  %v307 = vadd.f32 %v251, %v306
  %308 = vmatmul.f32.gmra.mxu0 %v29
  %v309 = vpop.f32.mrf.mxu0
  %v310 = vadd.f32 %v254, %v309
  %311 = vmatmul.f32.gmra.mxu0 %v36
  %v312 = vpop.f32.mrf.mxu0
  %v313 = vadd.f32 %v257, %v312
  %314 = vmatmul.f32.gmra.mxu0 %v43
  %v315 = vpop.f32.mrf.mxu0
  %v316 = vadd.f32 %v260, %v315
  %317 = vmatmul.f32.gmra.mxu0 %v50
  %v318 = vpop.f32.mrf.mxu0
  %v319 = vadd.f32 %v263, %v318
  %320 = vmatmul.f32.gmra.mxu0 %v57
  %v321 = vpop.f32.mrf.mxu0
  %v322 = vadd.f32 %v266, %v321
  %323 = vmatmul.f32.gmra.mxu0 %v64
  %v324 = vpop.f32.mrf.mxu0
  %v325 = vadd.f32 %v269, %v324
  %326 = vmatmul.f32.gmra.mxu0 %v71
  %v327 = vpop.f32.mrf.mxu0
  %v328 = vadd.f32 %v272, %v327
  %329 = vmatmul.f32.gmra.mxu0 %v78
  %v330 = vpop.f32.mrf.mxu0
  %v331 = vadd.f32 %v275, %v330
  %332 = vmatmul.f32.gmra.mxu0 %v85
  %v333 = vpop.f32.mrf.mxu0
  %v334 = vadd.f32 %v278, %v333
  %335 = vmatmul.f32.gmra.mxu0 %v92
  %v336 = vpop.f32.mrf.mxu0
  %v337 = vadd.f32 %v281, %v336
  %338 = vmatmul.f32.gmra.mxu0 %v99
  %v339 = vpop.f32.mrf.mxu0
  %v340 = vadd.f32 %v284, %v339
  %341 = vdwg.mxu0
  %342 = vmatpush.msra.mxu0 %v152
  %343 = vmatpush.msra.mxu0 %v151
  %344 = vmatpush.msra.mxu0 %v150
  %345 = vmatpush.msra.mxu0 %v149
  %346 = vmatpush.msra.mxu0 %v148
  %347 = vmatpush.msra.mxu0 %v147
  %348 = vmatpush.msra.mxu0 %v146
  %349 = vmatpush.msra.mxu0 %v145
  %350 = vmatpush.msra.mxu0 %v144
  %351 = vmatpush.msra.mxu0 %v143
  %352 = vmatpush.msra.mxu0 %v142
  %353 = vmatpush.msra.mxu0 %v141
  %354 = vmatpush.msra.mxu0 %v140
  %355 = vmatpush.msra.mxu0 %v139
  %356 = vmatpush.msra.mxu0 %v138
  %357 = vmatpush.msra.mxu0 %v137
  %358 = vmatmul.f32.gmra.mxu0 %v16
  %v359 = vpop.f32.mrf.mxu0
  %v360 = vadd.f32 %v304, %v359
  %361 = vmatmul.f32.gmra.mxu0 %v23
  %v362 = vpop.f32.mrf.mxu0
  %v363 = vadd.f32 %v307, %v362
  %364 = vmatmul.f32.gmra.mxu0 %v30
  %v365 = vpop.f32.mrf.mxu0
  %v366 = vadd.f32 %v310, %v365
  %367 = vmatmul.f32.gmra.mxu0 %v37
  %v368 = vpop.f32.mrf.mxu0
  %v369 = vadd.f32 %v313, %v368
  %370 = vmatmul.f32.gmra.mxu0 %v44
  %v371 = vpop.f32.mrf.mxu0
  %v372 = vadd.f32 %v316, %v371
  %373 = vmatmul.f32.gmra.mxu0 %v51
  %v374 = vpop.f32.mrf.mxu0
  %v375 = vadd.f32 %v319, %v374
  %376 = vmatmul.f32.gmra.mxu0 %v58
  %v377 = vpop.f32.mrf.mxu0
  %v378 = vadd.f32 %v322, %v377
  %379 = vmatmul.f32.gmra.mxu0 %v65
  %v380 = vpop.f32.mrf.mxu0
  %v381 = vadd.f32 %v325, %v380
  %382 = vmatmul.f32.gmra.mxu0 %v72
  %v383 = vpop.f32.mrf.mxu0
  %v384 = vadd.f32 %v328, %v383
  %385 = vmatmul.f32.gmra.mxu0 %v79
  %v386 = vpop.f32.mrf.mxu0
  %v387 = vadd.f32 %v331, %v386
  %388 = vmatmul.f32.gmra.mxu0 %v86
  %v389 = vpop.f32.mrf.mxu0
  %v390 = vadd.f32 %v334, %v389
  %391 = vmatmul.f32.gmra.mxu0 %v93
  %v392 = vpop.f32.mrf.mxu0
  %v393 = vadd.f32 %v337, %v392
  %394 = vmatmul.f32.gmra.mxu0 %v100
  %v395 = vpop.f32.mrf.mxu0
  %v396 = vadd.f32 %v340, %v395
  %397 = vdwg.mxu0
  %398 = vmatpush.msra.mxu0 %v168
  %399 = vmatpush.msra.mxu0 %v167
  %400 = vmatpush.msra.mxu0 %v166
  %401 = vmatpush.msra.mxu0 %v165
  %402 = vmatpush.msra.mxu0 %v164
  %403 = vmatpush.msra.mxu0 %v163
  %404 = vmatpush.msra.mxu0 %v162
  %405 = vmatpush.msra.mxu0 %v161
  %406 = vmatpush.msra.mxu0 %v160
  %407 = vmatpush.msra.mxu0 %v159
  %408 = vmatpush.msra.mxu0 %v158
  %409 = vmatpush.msra.mxu0 %v157
  %410 = vmatpush.msra.mxu0 %v156
  %411 = vmatpush.msra.mxu0 %v155
  %412 = vmatpush.msra.mxu0 %v154
  %413 = vmatpush.msra.mxu0 %v153
  %414 = vmatmul.f32.gmra.mxu0 %v17
  %v415 = vpop.f32.mrf.mxu0
  %v416 = vadd.f32 %v360, %v415
  %417 = vmatmul.f32.gmra.mxu0 %v24
  %v418 = vpop.f32.mrf.mxu0
  %v419 = vadd.f32 %v363, %v418
  %420 = vmatmul.f32.gmra.mxu0 %v31
  %v421 = vpop.f32.mrf.mxu0
  %v422 = vadd.f32 %v366, %v421
  %423 = vmatmul.f32.gmra.mxu0 %v38
  %v424 = vpop.f32.mrf.mxu0
  %v425 = vadd.f32 %v369, %v424
  %426 = vmatmul.f32.gmra.mxu0 %v45
  %v427 = vpop.f32.mrf.mxu0
  %v428 = vadd.f32 %v372, %v427
  %429 = vmatmul.f32.gmra.mxu0 %v52
  %v430 = vpop.f32.mrf.mxu0
  %v431 = vadd.f32 %v375, %v430
  %432 = vmatmul.f32.gmra.mxu0 %v59
  %v433 = vpop.f32.mrf.mxu0
  %v434 = vadd.f32 %v378, %v433
  %435 = vmatmul.f32.gmra.mxu0 %v66
  %v436 = vpop.f32.mrf.mxu0
  %v437 = vadd.f32 %v381, %v436
  %438 = vmatmul.f32.gmra.mxu0 %v73
  %v439 = vpop.f32.mrf.mxu0
  %v440 = vadd.f32 %v384, %v439
  %441 = vmatmul.f32.gmra.mxu0 %v80
  %v442 = vpop.f32.mrf.mxu0
  %v443 = vadd.f32 %v387, %v442
  %444 = vmatmul.f32.gmra.mxu0 %v87
  %v445 = vpop.f32.mrf.mxu0
  %v446 = vadd.f32 %v390, %v445
  %447 = vmatmul.f32.gmra.mxu0 %v94
  %v448 = vpop.f32.mrf.mxu0
  %v449 = vadd.f32 %v393, %v448
  %450 = vmatmul.f32.gmra.mxu0 %v101
  %v451 = vpop.f32.mrf.mxu0
  %v452 = vadd.f32 %v396, %v451
  %453 = vdwg.mxu0
  %454 = vmatpush.msra.mxu0 %v184
  %455 = vmatpush.msra.mxu0 %v183
  %456 = vmatpush.msra.mxu0 %v182
  %457 = vmatpush.msra.mxu0 %v181
  %458 = vmatpush.msra.mxu0 %v180
  %459 = vmatpush.msra.mxu0 %v179
  %460 = vmatpush.msra.mxu0 %v178
  %461 = vmatpush.msra.mxu0 %v177
  %462 = vmatpush.msra.mxu0 %v176
  %463 = vmatpush.msra.mxu0 %v175
  %464 = vmatpush.msra.mxu0 %v174
  %465 = vmatpush.msra.mxu0 %v173
  %466 = vmatpush.msra.mxu0 %v172
  %467 = vmatpush.msra.mxu0 %v171
  %468 = vmatpush.msra.mxu0 %v170
  %469 = vmatpush.msra.mxu0 %v169
  %470 = vmatmul.f32.gmra.mxu0 %v18
  %v471 = vpop.f32.mrf.mxu0
  %v472 = vadd.f32 %v416, %v471
  %473 = vmatmul.f32.gmra.mxu0 %v25
  %v474 = vpop.f32.mrf.mxu0
  %v475 = vadd.f32 %v419, %v474
  %476 = vmatmul.f32.gmra.mxu0 %v32
  %v477 = vpop.f32.mrf.mxu0
  %v478 = vadd.f32 %v422, %v477
  %479 = vmatmul.f32.gmra.mxu0 %v39
  %v480 = vpop.f32.mrf.mxu0
  %v481 = vadd.f32 %v425, %v480
  %482 = vmatmul.f32.gmra.mxu0 %v46
  %v483 = vpop.f32.mrf.mxu0
  %v484 = vadd.f32 %v428, %v483
  %485 = vmatmul.f32.gmra.mxu0 %v53
  %v486 = vpop.f32.mrf.mxu0
  %v487 = vadd.f32 %v431, %v486
  %488 = vmatmul.f32.gmra.mxu0 %v60
  %v489 = vpop.f32.mrf.mxu0
  %v490 = vadd.f32 %v434, %v489
  %491 = vmatmul.f32.gmra.mxu0 %v67
  %v492 = vpop.f32.mrf.mxu0
  %v493 = vadd.f32 %v437, %v492
  %494 = vmatmul.f32.gmra.mxu0 %v74
  %v495 = vpop.f32.mrf.mxu0
  %v496 = vadd.f32 %v440, %v495
  %497 = vmatmul.f32.gmra.mxu0 %v81
  %v498 = vpop.f32.mrf.mxu0
  %v499 = vadd.f32 %v443, %v498
  %500 = vmatmul.f32.gmra.mxu0 %v88
  %v501 = vpop.f32.mrf.mxu0
  %v502 = vadd.f32 %v446, %v501
  %503 = vmatmul.f32.gmra.mxu0 %v95
  %v504 = vpop.f32.mrf.mxu0
  %v505 = vadd.f32 %v449, %v504
  %506 = vmatmul.f32.gmra.mxu0 %v102
  %v507 = vpop.f32.mrf.mxu0
  %v508 = vadd.f32 %v452, %v507
  %509 = vdwg.mxu0
  %510 = vmatpush.msra.mxu0 %v200
  %511 = vmatpush.msra.mxu0 %v199
  %512 = vmatpush.msra.mxu0 %v198
  %513 = vmatpush.msra.mxu0 %v197
  %514 = vmatpush.msra.mxu0 %v196
  %515 = vmatpush.msra.mxu0 %v195
  %516 = vmatpush.msra.mxu0 %v194
  %517 = vmatpush.msra.mxu0 %v193
  %518 = vmatpush.msra.mxu0 %v192
  %519 = vmatpush.msra.mxu0 %v191
  %520 = vmatpush.msra.mxu0 %v190
  %521 = vmatpush.msra.mxu0 %v189
  %522 = vmatpush.msra.mxu0 %v188
  %523 = vmatpush.msra.mxu0 %v187
  %524 = vmatpush.msra.mxu0 %v186
  %525 = vmatpush.msra.mxu0 %v185
  %526 = vmatmul.f32.gmra.mxu0 %v19
  %v527 = vpop.f32.mrf.mxu0
  %v528 = vadd.f32 %v472, %v527
  %529 = vmatmul.f32.gmra.mxu0 %v26
  %v530 = vpop.f32.mrf.mxu0
  %v531 = vadd.f32 %v475, %v530
  %532 = vmatmul.f32.gmra.mxu0 %v33
  %v533 = vpop.f32.mrf.mxu0
  %v534 = vadd.f32 %v478, %v533
  %535 = vmatmul.f32.gmra.mxu0 %v40
  %v536 = vpop.f32.mrf.mxu0
  %v537 = vadd.f32 %v481, %v536
  %538 = vmatmul.f32.gmra.mxu0 %v47
  %v539 = vpop.f32.mrf.mxu0
  %v540 = vadd.f32 %v484, %v539
  %541 = vmatmul.f32.gmra.mxu0 %v54
  %v542 = vpop.f32.mrf.mxu0
  %v543 = vadd.f32 %v487, %v542
  %544 = vmatmul.f32.gmra.mxu0 %v61
  %v545 = vpop.f32.mrf.mxu0
  %v546 = vadd.f32 %v490, %v545
  %547 = vmatmul.f32.gmra.mxu0 %v68
  %v548 = vpop.f32.mrf.mxu0
  %v549 = vadd.f32 %v493, %v548
  %550 = vmatmul.f32.gmra.mxu0 %v75
  %v551 = vpop.f32.mrf.mxu0
  %v552 = vadd.f32 %v496, %v551
  %553 = vmatmul.f32.gmra.mxu0 %v82
  %v554 = vpop.f32.mrf.mxu0
  %v555 = vadd.f32 %v499, %v554
  %556 = vmatmul.f32.gmra.mxu0 %v89
  %v557 = vpop.f32.mrf.mxu0
  %v558 = vadd.f32 %v502, %v557
  %559 = vmatmul.f32.gmra.mxu0 %v96
  %v560 = vpop.f32.mrf.mxu0
  %v561 = vadd.f32 %v505, %v560
  %562 = vmatmul.f32.gmra.mxu0 %v103
  %v563 = vpop.f32.mrf.mxu0
  %v564 = vadd.f32 %v508, %v563
  %565 = vdwg.mxu0
  %566 = vmatpush.msra.mxu0 %v216
  %567 = vmatpush.msra.mxu0 %v215
  %568 = vmatpush.msra.mxu0 %v214
  %569 = vmatpush.msra.mxu0 %v213
  %570 = vmatpush.msra.mxu0 %v212
  %571 = vmatpush.msra.mxu0 %v211
  %572 = vmatpush.msra.mxu0 %v210
  %573 = vmatpush.msra.mxu0 %v209
  %574 = vmatpush.msra.mxu0 %v208
  %575 = vmatpush.msra.mxu0 %v207
  %576 = vmatpush.msra.mxu0 %v206
  %577 = vmatpush.msra.mxu0 %v205
  %578 = vmatpush.msra.mxu0 %v204
  %579 = vmatpush.msra.mxu0 %v203
  %580 = vmatpush.msra.mxu0 %v202
  %581 = vmatpush.msra.mxu0 %v201
  %582 = vmatmul.f32.gmra.mxu0 %v20
  %v583 = vpop.f32.mrf.mxu0
  %v584 = vadd.f32 %v528, %v583
  %585 = vmatmul.f32.gmra.mxu0 %v27
  %v586 = vpop.f32.mrf.mxu0
  %v587 = vadd.f32 %v531, %v586
  %588 = vmatmul.f32.gmra.mxu0 %v34
  %v589 = vpop.f32.mrf.mxu0
  %v590 = vadd.f32 %v534, %v589
  %591 = vmatmul.f32.gmra.mxu0 %v41
  %v592 = vpop.f32.mrf.mxu0
  %v593 = vadd.f32 %v537, %v592
  %594 = vmatmul.f32.gmra.mxu0 %v48
  %v595 = vpop.f32.mrf.mxu0
  %v596 = vadd.f32 %v540, %v595
  %597 = vmatmul.f32.gmra.mxu0 %v55
  %v598 = vpop.f32.mrf.mxu0
  %v599 = vadd.f32 %v543, %v598
  %600 = vmatmul.f32.gmra.mxu0 %v62
  %v601 = vpop.f32.mrf.mxu0
  %v602 = vadd.f32 %v546, %v601
  %603 = vmatmul.f32.gmra.mxu0 %v69
  %v604 = vpop.f32.mrf.mxu0
  %v605 = vadd.f32 %v549, %v604
  %606 = vmatmul.f32.gmra.mxu0 %v76
  %v607 = vpop.f32.mrf.mxu0
  %v608 = vadd.f32 %v552, %v607
  %609 = vmatmul.f32.gmra.mxu0 %v83
  %v610 = vpop.f32.mrf.mxu0
  %v611 = vadd.f32 %v555, %v610
  %612 = vmatmul.f32.gmra.mxu0 %v90
  %v613 = vpop.f32.mrf.mxu0
  %v614 = vadd.f32 %v558, %v613
  %615 = vmatmul.f32.gmra.mxu0 %v97
  %v616 = vpop.f32.mrf.mxu0
  %v617 = vadd.f32 %v561, %v616
  %618 = vmatmul.f32.gmra.mxu0 %v104
  %v619 = vpop.f32.mrf.mxu0
  %v620 = vadd.f32 %v564, %v619
  %621 = vdwg.mxu0
  %vm622 = vcmask 523264
  %623 = vst.msk [vmem:[%s3] sm:$0xff] %vm622, %v584
  %624 = vst.msk [vmem:[%s3 + $0x8] sm:$0xff] %vm622, %v587
  %625 = vst.msk [vmem:[%s3 + $0x10] sm:$0xff] %vm622, %v590
  %626 = vst.msk [vmem:[%s3 + $0x18] sm:$0xff] %vm622, %v593
  %627 = vst.msk [vmem:[%s3 + $0x20] sm:$0xff] %vm622, %v596
  %628 = vst.msk [vmem:[%s3 + $0x28] sm:$0xff] %vm622, %v599
  %629 = vst.msk [vmem:[%s3 + $0x30] sm:$0xff] %vm622, %v602
  %630 = vst.msk [vmem:[%s3 + $0x38] sm:$0xff] %vm622, %v605
  %631 = vst.msk [vmem:[%s3 + $0x40] sm:$0xff] %vm622, %v608
  %632 = vst.msk [vmem:[%s3 + $0x48] sm:$0xff] %vm622, %v611
  %633 = vst.msk [vmem:[%s3 + $0x50] sm:$0xff] %vm622, %v614
  %634 = vst.msk [vmem:[%s3 + $0x58] sm:$0xff] %vm622, %v617
  %635 = vst.msk [vmem:[%s3 + $0x60] sm:$0xff] %vm622, %v620
  // Predicated region
  $region14: #{tpu_custom_call.1} parent=0 // pred_check
    _
  $region15: #{tpu_custom_call.1} parent=0 // pred_check_branch
    %637 = sbr.rel (0) target = $region17
  $region16: #{tpu_custom_call.1} parent=0 // pred_region
    _
  $region17: #{tpu_custom_call.1} parent=0 // pred_fallthru
    _
  // Predicated region
  $region18: #{tpu_custom_call.1} parent=0 // pred_check
    _
  $region19: #{tpu_custom_call.1} parent=0 // pred_check_branch
    %639 = sbr.rel (0) target = $region21
  $region20: #{tpu_custom_call.1} parent=0 // pred_region
    _
  $region21: #{tpu_custom_call.1} parent=0 // pred_fallthru
    _

</llo_original>
